<compile_context>
chip_gen: v7x
topology: tpu7x:2x2x1
jax: 0.10.0
libtpu: 0.0.40
codegen_flags: <defaults>
</compile_context>

<pallas_src>
import functools

import jax
import jax.numpy as jnp
from jax.experimental import pallas as pl
from jax.experimental.pallas import tpu as pltpu


def _triplet_center_loss_kernel(x_ref, t_tile_ref, t_full_ref, c_ref, out_ref,
                                acc_ref, *, margin, num_classes, batch):
    i = pl.program_id(0)

    @pl.when(i == 0)
    def _init():
        acc_ref[...] = jnp.zeros_like(acc_ref)

    x = x_ref[...]                                    # (TB, D) f32  anchor rows
    tt = t_tile_ref[...]                              # (TB, 1) i32  labels of this tile
    tf = t_full_ref[...]                              # (B, 1)  i32  labels of whole batch
    c = c_ref[...]                                    # (C, D)  f32  class centers
    tile_rows = x.shape[0]

    # ---- squared distance from every anchor row to every class center ------
    # d2[r, k] = ||x_r||^2 + ||c_k||^2 - 2 <x_r, c_k>   (cross term on the MXU)
    x_sq = jnp.sum(x * x, axis=1, keepdims=True)                          # (TB, 1)
    ones_row = jnp.ones((1, x.shape[1]), jnp.float32)
    c_sq = jax.lax.dot_general(ones_row, c * c,                           # (1, C)
                               (((1,), (1,)), ((), ())),
                               preferred_element_type=jnp.float32)
    cross = jax.lax.dot_general(x, c,                                     # (TB, C) = x @ c^T
                                (((1,), (1,)), ((), ())),
                                preferred_element_type=jnp.float32)
    d2 = jnp.maximum(x_sq + c_sq - 2.0 * cross, 0.0)   # clamp tiny negative cancellation

    # ---- hardest positive / hardest negative, on squared distances ---------
    class_iota = jax.lax.broadcasted_iota(jnp.int32, (tile_rows, num_classes), 1)
    onehot = tt == class_iota                                             # (TB, C)
    # positive set always contains the anchor itself -> its own class center
    d2_ap = jnp.sum(jnp.where(onehot, d2, 0.0), axis=1, keepdims=True)    # (TB, 1)

    # a class is a valid "negative" only if some sample of that class is in the batch
    full_iota = jax.lax.broadcasted_iota(jnp.int32, (tf.shape[0], num_classes), 1)
    present = jnp.max((tf == full_iota).astype(jnp.float32), axis=0,
                      keepdims=True) > 0.5                                # (1, C)
    neg_ok = jnp.logical_and(present, jnp.logical_not(onehot))            # (TB, C)
    d2_an = jnp.min(jnp.where(neg_ok, d2, jnp.inf), axis=1, keepdims=True)  # (TB, 1)

    # sqrt only on the selected 2*TB values (monotone => same arg-max/min)
    dist_ap = jnp.sqrt(jnp.maximum(d2_ap, 1e-12))
    dist_an = jnp.sqrt(jnp.maximum(d2_an, 1e-12))
    # NOTE: if no other class is present in the batch, dist_an = +inf and the
    # hinge is 0 for that row.

    # MarginRankingLoss(margin)(dist_an, dist_ap, y=1) == mean(relu(dist_ap - dist_an + margin))
    hinge = jnp.maximum(dist_ap - dist_an + margin, 0.0)                  # (TB, 1)
    acc_ref[...] += jnp.sum(hinge, keepdims=True)                         # (1, 1) running sum

    @pl.when(i == pl.num_programs(0) - 1)
    def _finalize():
        out_ref[...] = acc_ref[...] * (1.0 / batch)


def _pick_row_tile(batch, dim):
    """Anchor-row tile: multiple of 8 dividing B, VMEM-budgeted (~4 MiB/f32 tile)."""
    cap = max(8, (4 * 1024 * 1024) // (4 * dim))
    cap = min(cap, 512)            # conservative enough for v7x's 64 MiB VMEM
    if batch <= cap:
        return batch               # single tile / full-extent block
    for tb in range(cap - cap % 8, 7, -8):
        if batch % tb == 0:
            return tb
    return batch                   # fallback: single tile if B has no nice divisor


def triplet_center_loss(inputs, targets, centers, margin=5.0):
    B, D = inputs.shape
    C, D2 = centers.shape
    assert D == D2
    x = inputs.astype(jnp.float32)
    c = centers.astype(jnp.float32)
    t2d = targets.astype(jnp.int32).reshape(B, 1)     # glue: targets as a column

    tb = _pick_row_tile(B, D)
    assert B % tb == 0
    grid = (B // tb,)

    kernel = functools.partial(_triplet_center_loss_kernel,
                               margin=float(margin), num_classes=C, batch=B)
    out = pl.pallas_call(
        kernel,
        out_shape=jax.ShapeDtypeStruct((1, 1), jnp.float32),
        grid_spec=pltpu.PrefetchScalarGridSpec(
            num_scalar_prefetch=0,
            grid=grid,
            in_specs=[
                pl.BlockSpec((tb, D), lambda i: (i, 0)),   # anchor rows (tiled)
                pl.BlockSpec((tb, 1), lambda i: (i, 0)),   # labels of this row tile
                pl.BlockSpec((B, 1), lambda i: (0, 0)),    # full labels (resident, class presence)
                pl.BlockSpec((C, D), lambda i: (0, 0)),    # all class centers (resident)
            ],
            out_specs=pl.BlockSpec((1, 1), lambda i: (0, 0)),
            scratch_shapes=[pltpu.VMEM((1, 1), jnp.float32)],   # running hinge sum
        ),
        # Row axis is a reduction into the shared accumulator -> "arbitrary".
        compiler_params=pltpu.CompilerParams(dimension_semantics=("arbitrary",)),
    )(x, t2d, t2d, c)
    return out[0, 0]


def _reference_loss(inputs, targets, centers, margin):
    # Pure-JAX mirror of the PyTorch forward, for validation only.
    centers_batch = centers[targets]                                      # (B, D)
    diff = inputs[:, None, :] - centers_batch[None, :, :]
    dist = jnp.sqrt(jnp.maximum(jnp.sum(diff * diff, axis=2), 1e-12))
    same = targets[:, None] == targets[None, :]
    dist_ap = jnp.max(jnp.where(same, dist, -jnp.inf), axis=1)
    dist_an = jnp.min(jnp.where(same, jnp.inf, dist), axis=1)
    return jnp.mean(jnp.maximum(dist_ap - dist_an + margin, 0.0))


if __name__ == "__main__":
    key = jax.random.PRNGKey(0)
    k_centers, k_inputs = jax.random.split(key)

    # small, module-consistent shapes: batch=8 embeddings of dim 256, 4 classes
    B, C, D = 8, 4, 256
    margin = 5.0

    # deterministic "parameter" init (stands in for nn.Parameter(torch.randn(C, D)))
    centers = jax.random.normal(k_centers, (C, D), dtype=jnp.float32)
    inputs = jax.random.normal(k_inputs, (B, D), dtype=jnp.float32)
    targets = jnp.array([0, 1, 2, 3, 0, 1, 2, 3], dtype=jnp.int32)

    loss = triplet_center_loss(inputs, targets, centers, margin)
    loss = jax.block_until_ready(loss)

    ref = jax.block_until_ready(_reference_loss(inputs, targets, centers, margin))
    assert abs(float(loss) - float(ref)) < 1e-3, (float(loss), float(ref))

    print("KERNEL_OK")
</pallas_src>

<mosaic_0001>
module attributes {stable_mosaic.version = 11 : i64} {
  func.func @_triplet_center_loss_kernel(%arg0: i32, %arg1: memref<8x256xf32, #tpu.memory_space<vmem>>, %arg2: memref<8x1xi32, #tpu.memory_space<vmem>>, %arg3: memref<8x1xi32, #tpu.memory_space<vmem>>, %arg4: memref<4x256xf32, #tpu.memory_space<vmem>>, %arg5: memref<1x1xf32, #tpu.memory_space<vmem>>, %arg6: memref<1x1xf32, #tpu.memory_space<vmem>>) attributes {dimension_semantics = [#tpu.dimension_semantics<arbitrary>], iteration_bounds = array<i64: 1>, scalar_prefetch = 0 : i64, scratch_operands = 1 : i64, tpu.core_type = #tpu.core_type<tc>, window_params = [{transform_indices = @transform_0, window_bounds = array<i64: 8, 256>}, {transform_indices = @transform_1, window_bounds = array<i64: 8, 1>}, {pipeline_mode = #tpu.pipeline_mode<synchronous>, transform_indices = @transform_2, window_bounds = array<i64: 8, 1>}, {pipeline_mode = #tpu.pipeline_mode<synchronous>, transform_indices = @transform_3, window_bounds = array<i64: 4, 256>}, {pipeline_mode = #tpu.pipeline_mode<synchronous>, transform_indices = @transform_4, window_bounds = array<i64: 1, 1>}]} {
    %c0_i32 = arith.constant 0 : i32
    %0 = arith.cmpi eq, %arg0, %c0_i32 : i32
    %1 = arith.extui %0 : i1 to i32
    %c0_i32_0 = arith.constant 0 : i32
    %2 = arith.cmpi ne, %1, %c0_i32_0 : i32
    scf.if %2 {
      %cst_31 = arith.constant 0.000000e+00 : f32
      %67 = vector.broadcast %cst_31 : f32 to vector<1x1xf32>
      %c0_32 = arith.constant 0 : index
      %c0_33 = arith.constant 0 : index
      %68 = vector.load %arg6[%c0_32, %c0_33] : memref<1x1xf32, #tpu.memory_space<vmem>>, vector<1x1xf32>
      tpu.vector_store %arg6[%c0_32, %c0_33], %67 {strides = array<i32>} : memref<1x1xf32, #tpu.memory_space<vmem>>, vector<1x1xf32>,
    } else {
    }
    %c0 = arith.constant 0 : index
    %c0_1 = arith.constant 0 : index
    %3 = vector.load %arg1[%c0, %c0_1] : memref<8x256xf32, #tpu.memory_space<vmem>>, vector<8x256xf32>
    %c0_2 = arith.constant 0 : index
    %c0_3 = arith.constant 0 : index
    %4 = vector.load %arg2[%c0_2, %c0_3] : memref<8x1xi32, #tpu.memory_space<vmem>>, vector<8x1xi32>
    %c0_4 = arith.constant 0 : index
    %c0_5 = arith.constant 0 : index
    %5 = vector.load %arg3[%c0_4, %c0_5] : memref<8x1xi32, #tpu.memory_space<vmem>>, vector<8x1xi32>
    %c0_6 = arith.constant 0 : index
    %c0_7 = arith.constant 0 : index
    %6 = vector.load %arg4[%c0_6, %c0_7] : memref<4x256xf32, #tpu.memory_space<vmem>>, vector<4x256xf32>
    %7 = arith.mulf %3, %3 : vector<8x256xf32>
    %cst = arith.constant dense<0.000000e+00> : vector<8xf32>
    %8 = vector.multi_reduction <add>, %7, %cst [1] : vector<8x256xf32> to vector<8xf32>
    %9 = vector.shape_cast %8 : vector<8xf32> to vector<8x1xf32>
    %cst_8 = arith.constant 1.000000e+00 : f32
    %10 = vector.broadcast %cst_8 : f32 to vector<1x256xf32>
    %11 = arith.mulf %6, %6 : vector<4x256xf32>
    %cst_9 = arith.constant dense<0.000000e+00> : vector<1x4xf32>
    %12 = tpu.matmul %10, %11, %cst_9 {dimension_numbers = #tpu.dot_dimension_numbers<[1], [1], [0], [0], [0, 0, 1, 0], [], []>} : vector<1x256xf32>, vector<4x256xf32>, vector<1x4xf32> -> vector<1x4xf32>
    %cst_10 = arith.constant dense<0.000000e+00> : vector<8x4xf32>
    %13 = tpu.matmul %3, %6, %cst_10 {dimension_numbers = #tpu.dot_dimension_numbers<[1], [1], [0], [0], [0, 0, 1, 0], [], []>} : vector<8x256xf32>, vector<4x256xf32>, vector<8x4xf32> -> vector<8x4xf32>
    %14 = vector.broadcast %9 : vector<8x1xf32> to vector<8x4xf32>
    %15 = vector.broadcast %12 : vector<1x4xf32> to vector<8x4xf32>
    %16 = arith.addf %14, %15 : vector<8x4xf32>
    %cst_11 = arith.constant 2.000000e+00 : f32
    %17 = vector.broadcast %cst_11 : f32 to vector<8x4xf32>
    %18 = arith.mulf %17, %13 : vector<8x4xf32>
    %19 = arith.subf %16, %18 : vector<8x4xf32>
    %cst_12 = arith.constant 0.000000e+00 : f32
    %20 = vector.broadcast %cst_12 : f32 to vector<8x4xf32>
    %21 = arith.maximumf %19, %20 : vector<8x4xf32>
    %22 = tpu.iota {dimensions = array<i32: 1>} : vector<8x4xi32>
    %23 = vector.broadcast %4 : vector<8x1xi32> to vector<8x4xi32>
    %24 = arith.cmpi eq, %23, %22 : vector<8x4xi32>
    %cst_13 = arith.constant 0.000000e+00 : f32
    %25 = vector.broadcast %cst_13 : f32 to vector<8x4xf32>
    %26 = arith.select %24, %21, %25 : vector<8x4xi1>, vector<8x4xf32>
    %cst_14 = arith.constant dense<0.000000e+00> : vector<8xf32>
    %27 = vector.multi_reduction <add>, %26, %cst_14 [1] : vector<8x4xf32> to vector<8xf32>
    %28 = vector.shape_cast %27 : vector<8xf32> to vector<8x1xf32>
    %29 = tpu.iota {dimensions = array<i32: 1>} : vector<8x4xi32>
    %30 = vector.broadcast %5 : vector<8x1xi32> to vector<8x4xi32>
    %31 = arith.cmpi eq, %30, %29 : vector<8x4xi32>
    %32 = arith.extui %31 : vector<8x4xi1> to vector<8x4xi32>
    %33 = arith.sitofp %32 : vector<8x4xi32> to vector<8x4xf32>
    %cst_15 = arith.constant dense<0xFF800000> : vector<4xf32>
    %34 = vector.multi_reduction <maximumf>, %33, %cst_15 [0] : vector<8x4xf32> to vector<4xf32>
    %35 = vector.shape_cast %34 : vector<4xf32> to vector<1x4xf32>
    %cst_16 = arith.constant 5.000000e-01 : f32
    %36 = vector.broadcast %cst_16 : f32 to vector<1x4xf32>
    %37 = arith.cmpf ogt, %35, %36 : vector<1x4xf32>
    %cst_17 = arith.constant dense<true> : vector<8x4xi1>
    %38 = arith.xori %24, %cst_17 : vector<8x4xi1>
    %39 = vector.broadcast %37 : vector<1x4xi1> to vector<8x4xi1>
    %40 = arith.andi %39, %38 : vector<8x4xi1>
    %cst_18 = arith.constant 0x7F800000 : f32
    %41 = vector.broadcast %cst_18 : f32 to vector<8x4xf32>
    %42 = arith.select %40, %21, %41 : vector<8x4xi1>, vector<8x4xf32>
    %cst_19 = arith.constant dense<0x7F800000> : vector<8xf32>
    %43 = vector.multi_reduction <minimumf>, %42, %cst_19 [1] : vector<8x4xf32> to vector<8xf32>
    %44 = vector.shape_cast %43 : vector<8xf32> to vector<8x1xf32>
    %cst_20 = arith.constant 9.99999996E-13 : f32
    %45 = vector.broadcast %cst_20 : f32 to vector<8x1xf32>
    %46 = arith.maximumf %28, %45 : vector<8x1xf32>
    %47 = math.sqrt %46 : vector<8x1xf32>
    %cst_21 = arith.constant 9.99999996E-13 : f32
    %48 = vector.broadcast %cst_21 : f32 to vector<8x1xf32>
    %49 = arith.maximumf %44, %48 : vector<8x1xf32>
    %50 = math.sqrt %49 : vector<8x1xf32>
    %51 = arith.subf %47, %50 : vector<8x1xf32>
    %cst_22 = arith.constant 5.000000e+00 : f32
    %52 = vector.broadcast %cst_22 : f32 to vector<8x1xf32>
    %53 = arith.addf %51, %52 : vector<8x1xf32>
    %cst_23 = arith.constant 0.000000e+00 : f32
    %54 = vector.broadcast %cst_23 : f32 to vector<8x1xf32>
    %55 = arith.maximumf %53, %54 : vector<8x1xf32>
    %c0_24 = arith.constant 0 : index
    %c0_25 = arith.constant 0 : index
    %56 = vector.load %arg6[%c0_24, %c0_25] : memref<1x1xf32, #tpu.memory_space<vmem>>, vector<1x1xf32>
    %57 = vector.shape_cast %55 : vector<8x1xf32> to vector<1x8x1xf32>
    %cst_26 = arith.constant dense<0.000000e+00> : vector<1xf32>
    %58 = vector.multi_reduction <add>, %57, %cst_26 [1, 2] : vector<1x8x1xf32> to vector<1xf32>
    %59 = vector.shape_cast %58 : vector<1xf32> to vector<1x1x1xf32>
    %60 = vector.extract %59[0, 0, 0] : f32 from vector<1x1x1xf32>
    %61 = vector.broadcast %60 : f32 to vector<1x1xf32>
    %62 = arith.addf %56, %61 : vector<1x1xf32>
    %c0_27 = arith.constant 0 : index
    %c0_28 = arith.constant 0 : index
    %63 = vector.load %arg6[%c0_27, %c0_28] : memref<1x1xf32, #tpu.memory_space<vmem>>, vector<1x1xf32>
    tpu.vector_store %arg6[%c0_27, %c0_28], %62 {strides = array<i32>} : memref<1x1xf32, #tpu.memory_space<vmem>>, vector<1x1xf32>,
    %c0_i32_29 = arith.constant 0 : i32
    %64 = arith.cmpi eq, %arg0, %c0_i32_29 : i32
    %65 = arith.extui %64 : i1 to i32
    %c0_i32_30 = arith.constant 0 : i32
    %66 = arith.cmpi ne, %65, %c0_i32_30 : i32
    scf.if %66 {
      %c0_31 = arith.constant 0 : index
      %c0_32 = arith.constant 0 : index
      %67 = vector.load %arg6[%c0_31, %c0_32] : memref<1x1xf32, #tpu.memory_space<vmem>>, vector<1x1xf32>
      %cst_33 = arith.constant 1.250000e-01 : f32
      %68 = vector.broadcast %cst_33 : f32 to vector<1x1xf32>
      %69 = arith.mulf %67, %68 : vector<1x1xf32>
      %c0_34 = arith.constant 0 : index
      %c0_35 = arith.constant 0 : index
      %70 = vector.load %arg5[%c0_34, %c0_35] : memref<1x1xf32, #tpu.memory_space<vmem>>, vector<1x1xf32>
      tpu.vector_store %arg5[%c0_34, %c0_35], %69 {strides = array<i32>} : memref<1x1xf32, #tpu.memory_space<vmem>>, vector<1x1xf32>,
    } else {
    }
    return
  }
  func.func @transform_0(%arg0: i32) -> (i32, i32) {
    %c0_i32 = arith.constant 0 : i32
    %c0_i32_0 = arith.constant 0 : i32
    return %arg0, %c0_i32 : i32, i32
  }
  func.func @transform_1(%arg0: i32) -> (i32, i32) {
    %c0_i32 = arith.constant 0 : i32
    %c0_i32_0 = arith.constant 0 : i32
    return %arg0, %c0_i32 : i32, i32
  }
  func.func @transform_2(%arg0: i32) -> (i32, i32) {
    %c0_i32 = arith.constant 0 : i32
    %c0_i32_0 = arith.constant 0 : i32
    %c0_i32_1 = arith.constant 0 : i32
    return %c0_i32, %c0_i32_0 : i32, i32
  }
  func.func @transform_3(%arg0: i32) -> (i32, i32) {
    %c0_i32 = arith.constant 0 : i32
    %c0_i32_0 = arith.constant 0 : i32
    %c0_i32_1 = arith.constant 0 : i32
    return %c0_i32, %c0_i32_0 : i32, i32
  }
  func.func @transform_4(%arg0: i32) -> (i32, i32) {
    %c0_i32 = arith.constant 0 : i32
    %c0_i32_0 = arith.constant 0 : i32
    %c0_i32_1 = arith.constant 0 : i32
    return %c0_i32, %c0_i32_0 : i32, i32
  }
}

</mosaic_0001>

<llo_original>
// kernel: tpu_custom_call.1
$region0: #{tpu_custom_call.1}
  #allocation0 [shape = 'u32[]', space=smem, size = 0x4, offset = 0x4, fixed_abs, tag = 'smem constant byte address 0x4 - core index']
  #allocation1 [shape = 'u32[144,128]{1,0:T(1,128)}', space=vmem, size = 0x12000, scoped, tag = 'internal scratch']
  #allocation2 [shape = 'f32[1,1]{1,0:T(1,128)}', space=vmem, size = 0x200, scoped, tag = 'scratch operand']
  %s0 = inlined_call_operand.vmem [shape: f32[8,256], index: 0, kind: input, shape index: {}]
  %s1 = inlined_call_operand.vmem [shape: s32[8,1], index: 1, kind: input, shape index: {}]
  %s2 = inlined_call_operand.vmem [shape: s32[8,1], index: 2, kind: input, shape index: {}]
  %s3 = inlined_call_operand.vmem [shape: f32[4,256], index: 3, kind: input, shape index: {}]
  %s4 = inlined_call_operand.hbm [shape: f32[1,1], index: 4, kind: output, shape index: {}]
  %s5 = sld [smem:[#allocation0]]
  $region34: #{tpu_custom_call.1} parent=0
    _
  %s7 = ssub.s32 1, %s5
  %s8 = scalar_select 0, %s7, %s5
  $region1: #{tpu_custom_call.1} parent=0
    #allocation3 [shape = 'u8[512]{0}', space=vmem, size = 0x400, scoped, tag = 'output window, operand 0, single buffered']
    #allocation4 [shape = 's32[1]{0}', space=sflag, size = 0x4, scoped, tag = 'scoped memory for tpu_custom_call.1']
    %9 = vsyncpa [#allocation4], 0
    // Predicated region
    $region2: #{tpu_custom_call.1} parent=1 // pred_check
      _
    $region3: #{tpu_custom_call.1} parent=1 // pred_check_branch
      %11 = sbr.rel (0) target = $region5
    $region4: #{tpu_custom_call.1} parent=1 // pred_region
      _
    $region5: #{tpu_custom_call.1} parent=1 // pred_fallthru
      _
    // Predicated region
    $region6: #{tpu_custom_call.1} parent=1 // pred_check
      _
    $region7: #{tpu_custom_call.1} parent=1 // pred_check_branch
      %13 = sbr.rel (0) target = $region9
    $region8: #{tpu_custom_call.1} parent=1 // pred_region
      _
    $region9: #{tpu_custom_call.1} parent=1 // pred_fallthru
      _
    // Predicated region
    $region10: #{tpu_custom_call.1} parent=1 // pred_check
      _
    $region11: #{tpu_custom_call.1} parent=1 // pred_check_branch
      %15 = sbr.rel (0) target = $region13
    $region12: #{tpu_custom_call.1} parent=1 // pred_region
      _
    $region13: #{tpu_custom_call.1} parent=1 // pred_fallthru
      _
    // Predicated region
    $region14: #{tpu_custom_call.1} parent=1 // pred_check
      _
    $region15: #{tpu_custom_call.1} parent=1 // pred_check_branch
      %17 = sbr.rel (0) target = $region17
    $region16: #{tpu_custom_call.1} parent=1 // pred_region
      _
    $region17: #{tpu_custom_call.1} parent=1 // pred_fallthru
      _
    %p18 = scmp.eq.s32.totalorder 0, 0
    // Predicated region
    $region18: #{tpu_custom_call.1} parent=1 // pred_check
      %p19 = pneg %p18
    $region19: #{tpu_custom_call.1} parent=1 // pred_check_branch
      %21 = sbr.rel (%p19) target = $region21
    $region20: #{tpu_custom_call.1} parent=1 // pred_region
      %vm22 = vcmask 0
      %23 = vst.msk [vmem:[#allocation2] sm:$0x1] %vm22, 0.0
    $region21: #{tpu_custom_call.1} parent=1 // pred_fallthru
      _
    %v24 = vld [vmem:[%s0] sm:$0xff]
    %v25 = vld [vmem:[%s0 + $0x8] sm:$0xff]
    %v26 = vld [vmem:[%s1] sm:$0xff]
    %v27 = vld [vmem:[%s2] sm:$0xff]
    %v28 = vld [vmem:[%s3] sm:$0xff]
    %v29 = vmul.f32 %v24, %v24
    %v30 = vmul.f32 %v25, %v25
    %v31 = vadd.f32 %v29, %v30
    %32 = vadd.xlane.f32.xlu0 %v31
    %v33 = vpop.xlane.xlu0 %32
    %v34 = vmul.f32 %v28, %v28
    %v36 = vcombine.high %v34, %v34
    %38 = vmatprep.subr.mxu0 %v36
    %39 = vmatpush1.xpose.msra.mxu0 %v34
    %40 = vmatprep.subr.mxu0 0.0
    %41 = vmatpush1.xpose.msra.mxu0 0.0
    %42 = vmatprep.subr.mxu0 0.0
    %43 = vmatpush1.xpose.msra.mxu0 0.0
    %44 = vmatprep.subr.mxu0 0.0
    %45 = vmatpush1.xpose.msra.mxu0 0.0
    %46 = vmatprep.subr.mxu0 0.0
    %47 = vmatpush1.xpose.msra.mxu0 0.0
    %48 = vmatprep.subr.mxu0 0.0
    %49 = vmatpush1.xpose.msra.mxu0 0.0
    %50 = vmatprep.subr.mxu0 0.0
    %51 = vmatpush1.xpose.msra.mxu0 0.0
    %52 = vmatprep.subr.mxu0 0.0
    %53 = vmatpush1.xpose.msra.mxu0 0.0
    %54 = vmatprep.subr.mxu0 0.0
    %55 = vmatpush1.xpose.msra.mxu0 0.0
    %56 = vmatprep.subr.mxu0 0.0
    %57 = vmatpush1.xpose.msra.mxu0 0.0
    %58 = vmatprep.subr.mxu0 0.0
    %59 = vmatpush1.xpose.msra.mxu0 0.0
    %60 = vmatprep.subr.mxu0 0.0
    %61 = vmatpush1.xpose.msra.mxu0 0.0
    %62 = vmatprep.subr.mxu0 0.0
    %63 = vmatpush1.xpose.msra.mxu0 0.0
    %64 = vmatprep.subr.mxu0 0.0
    %65 = vmatpush1.xpose.msra.mxu0 0.0
    %66 = vmatprep.subr.mxu0 0.0
    %67 = vmatpush1.xpose.msra.mxu0 0.0
    %68 = vmatprep.subr.mxu0 0.0
    %69 = vmatpush1.xpose.msra.mxu0 0.0
    %70 = vmatprep.subr.mxu0 0.0
    %71 = vmatpush1.xpose.msra.mxu0 0.0
    %72 = vmatprep.subr.mxu0 0.0
    %73 = vmatpush1.xpose.msra.mxu0 0.0
    %74 = vmatprep.subr.mxu0 0.0
    %75 = vmatpush1.xpose.msra.mxu0 0.0
    %76 = vmatprep.subr.mxu0 0.0
    %77 = vmatpush1.xpose.msra.mxu0 0.0
    %78 = vmatprep.subr.mxu0 0.0
    %79 = vmatpush1.xpose.msra.mxu0 0.0
    %80 = vmatprep.subr.mxu0 0.0
    %81 = vmatpush1.xpose.msra.mxu0 0.0
    %82 = vmatprep.subr.mxu0 0.0
    %83 = vmatpush1.xpose.msra.mxu0 0.0
    %84 = vmatprep.subr.mxu0 0.0
    %85 = vmatpush1.xpose.msra.mxu0 0.0
    %86 = vmatprep.subr.mxu0 0.0
    %87 = vmatpush1.xpose.msra.mxu0 0.0
    %88 = vmatprep.subr.mxu0 0.0
    %89 = vmatpush1.xpose.msra.mxu0 0.0
    %90 = vmatprep.subr.mxu0 0.0
    %91 = vmatpush1.xpose.msra.mxu0 0.0
    %92 = vmatprep.subr.mxu0 0.0
    %93 = vmatpush1.xpose.msra.mxu0 0.0
    %94 = vmatprep.subr.mxu0 0.0
    %95 = vmatpush1.xpose.msra.mxu0 0.0
    %96 = vmatprep.subr.mxu0 0.0
    %97 = vmatpush1.xpose.msra.mxu0 0.0
    %98 = vmatprep.subr.mxu0 0.0
    %99 = vmatpush1.xpose.msra.mxu0 0.0
    %100 = vmatprep.subr.mxu0 0.0
    %101 = vmatpush1.xpose.msra.mxu0 0.0
    %102 = vmatprep.mubr.f32.mxu0 1.0
    %103 = vmatmul.mubr.f32.gmra.mrb[0].mxu0 1.0
    %v104 = vpop.f32.mrb[0].mxu0
    %v105 = vadd.f32 0.0, %v104
    %v106 = vpop.f32.mrb[0].mxu0
    %107 = vdwg.mxu0
    %v109 = vcombine.high %v28, %v28
    %111 = vmatprep.subr.mxu0 %v109
    %112 = vmatpush1.xpose.msra.mxu0 %v28
    %113 = vmatprep.subr.mxu0 0.0
    %114 = vmatpush1.xpose.msra.mxu0 0.0
    %115 = vmatprep.subr.mxu0 0.0
    %116 = vmatpush1.xpose.msra.mxu0 0.0
    %117 = vmatprep.subr.mxu0 0.0
    %118 = vmatpush1.xpose.msra.mxu0 0.0
    %119 = vmatprep.subr.mxu0 0.0
    %120 = vmatpush1.xpose.msra.mxu0 0.0
    %121 = vmatprep.subr.mxu0 0.0
    %122 = vmatpush1.xpose.msra.mxu0 0.0
    %123 = vmatprep.subr.mxu0 0.0
    %124 = vmatpush1.xpose.msra.mxu0 0.0
    %125 = vmatprep.subr.mxu0 0.0
    %126 = vmatpush1.xpose.msra.mxu0 0.0
    %127 = vmatprep.subr.mxu0 0.0
    %128 = vmatpush1.xpose.msra.mxu0 0.0
    %129 = vmatprep.subr.mxu0 0.0
    %130 = vmatpush1.xpose.msra.mxu0 0.0
    %131 = vmatprep.subr.mxu0 0.0
    %132 = vmatpush1.xpose.msra.mxu0 0.0
    %133 = vmatprep.subr.mxu0 0.0
    %134 = vmatpush1.xpose.msra.mxu0 0.0
    %135 = vmatprep.subr.mxu0 0.0
    %136 = vmatpush1.xpose.msra.mxu0 0.0
    %137 = vmatprep.subr.mxu0 0.0
    %138 = vmatpush1.xpose.msra.mxu0 0.0
    %139 = vmatprep.subr.mxu0 0.0
    %140 = vmatpush1.xpose.msra.mxu0 0.0
    %141 = vmatprep.subr.mxu0 0.0
    %142 = vmatpush1.xpose.msra.mxu0 0.0
    %143 = vmatprep.subr.mxu0 0.0
    %144 = vmatpush1.xpose.msra.mxu0 0.0
    %145 = vmatprep.subr.mxu0 0.0
    %146 = vmatpush1.xpose.msra.mxu0 0.0
    %147 = vmatprep.subr.mxu0 0.0
    %148 = vmatpush1.xpose.msra.mxu0 0.0
    %149 = vmatprep.subr.mxu0 0.0
    %150 = vmatpush1.xpose.msra.mxu0 0.0
    %151 = vmatprep.subr.mxu0 0.0
    %152 = vmatpush1.xpose.msra.mxu0 0.0
    %153 = vmatprep.subr.mxu0 0.0
    %154 = vmatpush1.xpose.msra.mxu0 0.0
    %155 = vmatprep.subr.mxu0 0.0
    %156 = vmatpush1.xpose.msra.mxu0 0.0
    %157 = vmatprep.subr.mxu0 0.0
    %158 = vmatpush1.xpose.msra.mxu0 0.0
    %159 = vmatprep.subr.mxu0 0.0
    %160 = vmatpush1.xpose.msra.mxu0 0.0
    %161 = vmatprep.subr.mxu0 0.0
    %162 = vmatpush1.xpose.msra.mxu0 0.0
    %163 = vmatprep.subr.mxu0 0.0
    %164 = vmatpush1.xpose.msra.mxu0 0.0
    %165 = vmatprep.subr.mxu0 0.0
    %166 = vmatpush1.xpose.msra.mxu0 0.0
    %167 = vmatprep.subr.mxu0 0.0
    %168 = vmatpush1.xpose.msra.mxu0 0.0
    %169 = vmatprep.subr.mxu0 0.0
    %170 = vmatpush1.xpose.msra.mxu0 0.0
    %171 = vmatprep.subr.mxu0 0.0
    %172 = vmatpush1.xpose.msra.mxu0 0.0
    %173 = vmatprep.subr.mxu0 0.0
    %174 = vmatpush1.xpose.msra.mxu0 0.0
    %175 = vmatprep.mubr.f32.mxu0 %v25
    %176 = vmatmul.mubr.f32.gmra.mrb[0].mxu0 %v24
    %v177 = vpop.f32.mrb[0].mxu0
    %v178 = vadd.f32 0.0, %v177
    %v179 = vpop.f32.mrb[0].mxu0
    %180 = vdwg.mxu0
    %v181 = vlaneseq
    %v182 = vshrl.u32 %v181, 7
    %v183 = vsub.s32 0, %v182
    %v184 = vrot.slane %v105, %v183
    %v185 = vadd.f32 %v33, %v184
    %v186 = vmul.f32 %v178, 2.0
    %v187 = vsub.f32 %v185, %v186
    %v188 = vmax.f32 %v187, 0.0
    %v189 = vlaneseq
    %v190 = vand.u32 %v189, 127
    %191 = vset.pattern.permute.xlu0 0
    %192 = vperm.xlu0 %191, %v26
    %v193 = vpop.permute.xlu0 %192
    %vm194 = vcmp.eq.s32.totalorder %v193, %v190
    %v195 = vsel %vm194, %v188, 0.0
    %vm196 = vcmask 31744
    %v197 = vsel %vm196, %v195, 0.0
    %198 = vadd.xlane.f32.xlu0 %v197
    %v199 = vpop.xlane.xlu0 %198
    %200 = vset.pattern.permute.xlu0 0
    %201 = vperm.xlu0 %200, %v27
    %v202 = vpop.permute.xlu0 %201
    %vm203 = vcmp.eq.s32.totalorder %v202, %v190
    %v204 = vsel %vm203, 1, 0
    %v205 = vcvt.s32.f32 %v204
    %v206 = vsel %vm196, %v205, -inf
    %v207 = vrot.slane %v206, 4
    %v208 = vmax.f32 %v206, %v207
    %v209 = vrot.slane %v208, 2
    %v210 = vmax.f32 %v208, %v209
    %v211 = vrot.slane %v210, 1
    %v212 = vmax.f32 %v210, %v211
    %vm213 = vcmp.gt.f32.partialorder %v212, 0.5
    %vm214 = vmxor %vm194, 1
    %v215 = vsel %vm213, 1, 0
    %vm216 = vcmp.eq.s32.totalorder %v215, 1
    %vm217 = vmand %vm216, %vm214
    %v218 = vsel %vm217, %v188, inf
    %v219 = vsel %vm196, %v218, inf
    %220 = vmin.xlane.f32.xlu0 %v219
    %v221 = vpop.xlane.xlu0 %220
    %v222 = vmax.f32 %v199, 1e-12
    %v223 = vrsqrt.pop %v222
    %v224 = vmul.f32 %v222, %v223
    %vm225 = vcmp.eq.f32.partialorder %v222, inf
    %v226 = vsel %vm225, %v222, %v224
    %vm227 = vcmp.eq.f32.partialorder %v222, 0.0
    %v228 = vand.u32 %v222, 2147483648
    %v229 = vsel %vm227, %v228, %v226
    %v230 = vmax.f32 %v221, 1e-12
    %v231 = vrsqrt.pop %v230
    %v232 = vmul.f32 %v230, %v231
    %vm233 = vcmp.eq.f32.partialorder %v230, inf
    %v234 = vsel %vm233, %v230, %v232
    %vm235 = vcmp.eq.f32.partialorder %v230, 0.0
    %v236 = vand.u32 %v230, 2147483648
    %v237 = vsel %vm235, %v236, %v234
    %v238 = vsub.f32 %v229, %v237
    %v239 = vadd.f32 %v238, 5.0
    %v240 = vmax.f32 %v239, 0.0
    %v241 = vld [vmem:[#allocation2] sm:$0x1]
    %vm242 = vcmask 7168
    %v243 = vsel %vm242, %v240, 0.0
    %244 = vadd.xlane.f32.xlu0 %v243
    %v245 = vpop.xlane.xlu0 %244
    %v246 = vrot.slane %v245, 4
    %v247 = vadd.f32 %v245, %v246
    %v248 = vrot.slane %v247, 2
    %v249 = vadd.f32 %v247, %v248
    %v250 = vrot.slane %v249, 1
    %v251 = vadd.f32 %v249, %v250
    %s252 = vtos %v251
    %v253 = vstv %s252
    %v254 = vadd.f32 %v241, %v253
    %vm255 = vcmask 0
    %256 = vst.msk [vmem:[#allocation2] sm:$0x1] %vm255, %v254
    // Predicated region
    $region22: #{tpu_custom_call.1} parent=1 // pred_check
      %p257 = pneg %p18
    $region23: #{tpu_custom_call.1} parent=1 // pred_check_branch
      %259 = sbr.rel (%p257) target = $region25
    $region24: #{tpu_custom_call.1} parent=1 // pred_region
      %v260 = vld [vmem:[#allocation2] sm:$0x1]
      %v261 = vmul.f32 %v260, 0.125
      %262 = vst.msk [vmem:[#allocation3] sm:$0x1] %vm255, %v261
    $region25: #{tpu_custom_call.1} parent=1 // pred_fallthru
      _
    // Predicated region
    $region26: #{tpu_custom_call.1} parent=1 // pred_check
      _
    $region27: #{tpu_custom_call.1} parent=1 // pred_check_branch
      %264 = sbr.rel (0) target = $region29
    $region28: #{tpu_custom_call.1} parent=1 // pred_region
      %s266 = ssub.s32 16, 16
      %267 = vsyncadd [#allocation4], %s266
      %s269 = sshll.u32 [#allocation3], 4
      %s270 = int_to_ptr.vmem [resolvable:$true] %s269
      %272 = dma.vmem_to_hbm [thread:$0]  %s270, 16, %s4, [#allocation4]
    $region29: #{tpu_custom_call.1} parent=1 // pred_fallthru
      _
    // Predicated region
    $region30: #{tpu_custom_call.1} parent=1 // pred_check
      _
    $region31: #{tpu_custom_call.1} parent=1 // pred_check_branch
      %274 = sbr.rel (0) target = $region33
    $region32: #{tpu_custom_call.1} parent=1 // pred_region
      %275 = dma.done [#allocation4], 16
    $region33: #{tpu_custom_call.1} parent=1 // pred_fallthru
      _
    %276 = vsyncpa [#allocation4], 1

</llo_original>
